<compile_context>
chip_gen: v7x
topology: tpu7x:2x2x1
jax: 0.10.0
libtpu: 0.0.40
codegen_flags: <defaults>
</compile_context>

<pallas_src>
import functools

import jax
import jax.numpy as jnp
from jax.experimental import pallas as pl
from jax.experimental.pallas import tpu as pltpu


def _cdiv(a, b):
    return -(-a // b)


def _round_up(a, b):
    return _cdiv(a, b) * b


def _round_down(a, b):
    return (a // b) * b


# Below this total size, skip Pallas entirely: custom-call + grid-step overhead
# dominates and XLA will fuse the reduce into neighbouring ops for free.
_PALLAS_MIN_BYTES = 128 * 1024
# Only force >=2 row tiles (dual-TC / megacore split) when the input is at
# least this big; below that the extra grid step is pure overhead.
_MEGACORE_MIN_BYTES = 2 * 1024 * 1024


@functools.lru_cache(maxsize=None)
def _input_tile_budget_bytes():
    """Per-input-buffer VMEM budget, chosen per TPU generation.

    v6e / v7x: 8 MiB (2x8 MiB double-buffered input + tiny output/scratch stays
    well under their 32 MiB scoped-VMEM default; v7x physical is 64 MiB).
    v5e / unknown: 4 MiB, so the 16 MiB scoped default is never the constraint
    and no vmem_limit_bytes override is needed.
    """
    try:
        kind = jax.devices()[0].device_kind.lower()
    except Exception:
        kind = ""
    if ("v6" in kind) or ("7" in kind):
        return 8 * 1024 * 1024
    return 4 * 1024 * 1024


def _mean_rows_kernel(x_ref, o_ref, *, scale):
    # Single-step path (num_k == 1): x_ref is (TR, HW) with the FULL reduction
    # axis, o_ref is the lane-dense (1, TR) output block.  The cross-lane
    # reduce + sublane->lane relayout happens exactly once per row tile.
    x = x_ref[...].astype(jnp.float32)
    o_ref[...] = (jnp.sum(x, axis=-1)[None, :] * scale).astype(o_ref.dtype)


def _mean_rows_acc_kernel(x_ref, o_ref, acc_ref, *, scale, hw, tl):
    # Lane-tiled path (num_k > 1, only for very large H*W): accumulate partial
    # row sums in a (1, TR) f32 VMEM scratch resident across the lane grid
    # axis.  The last lane tile may run past the true H*W bound (no host-side
    # padding), so out-of-bounds lanes are masked to zero before accumulating.
    k = pl.program_id(1)

    @pl.when(k == 0)
    def _init():
        acc_ref[...] = jnp.zeros_like(acc_ref)

    x = x_ref[...].astype(jnp.float32)
    if hw % tl != 0:
        # Mandatory: the partial last block's OOB region is undefined garbage.
        col = jax.lax.broadcasted_iota(jnp.int32, x.shape, 1) + k * tl
        x = jnp.where(col < hw, x, 0.0)
    acc_ref[...] += jnp.sum(x, axis=-1)[None, :]

    @pl.when(k == pl.num_programs(1) - 1)
    def _finalize():
        # Fold 1/(H*W) as a compile-time constant; cast only at the store.
        o_ref[...] = (acc_ref[...] * scale).astype(o_ref.dtype)


def _global_mean_pallas(x):
    """Pallas path: (N, C, H, W) -> (N, C) global average pool."""
    N, C, H, W = x.shape
    NC, HW = N * C, H * W
    dtype = x.dtype
    itemsize = dtype.itemsize
    budget = _input_tile_budget_bytes()
    total_bytes = NC * HW * itemsize

    xf = x.reshape(NC, HW)

    # ---- Row (output) tile first: full NC when small, else a multiple of 128
    # so the lane-dense (1, tr) output block stays layout-legal with >1 tile.
    if NC <= 128:
        tr = NC
    else:
        tr = 128  # provisional; grown below if the budget allows

    # ---- Lane (reduction) tile: prefer the whole H*W axis in one block so the
    # reduction finishes in a single grid step (no accumulator loop, no lane
    # padding); otherwise tile it in multiples of 128 and mask in-kernel.
    if tr * HW * itemsize <= budget:
        tl = HW
        if NC > 128:
            # Grow the row tile into the remaining budget (no hard cap).
            tr = _round_down(budget // (HW * itemsize), 128)
            tr = min(tr, _round_up(NC, 128))
            if total_bytes >= _MEGACORE_MIN_BYTES:
                # Keep >=2 row tiles so the "parallel" axis can split across
                # TensorCores on dual-TC chips (v7x); costs at most one extra
                # ~0.35us grid step on single-TC chips, noise at these sizes.
                tr = min(tr, max(128, _round_up(_cdiv(NC, 2), 128)))
            if tr >= NC:
                tr = NC  # single full-dim row block (always layout-legal)
    else:
        tl = _round_down(budget // (max(tr, 8) * itemsize), 128)
        tl = max(tl, 128)
        tl = min(tl, _round_up(HW, 128))

    num_i = _cdiv(NC, tr)   # row tiles  -> "parallel" (megacore split)
    num_k = _cdiv(HW, tl)   # lane tiles -> "arbitrary" (in-VMEM reduction)
    scale = 1.0 / float(HW)

    cost = pl.CostEstimate(
        flops=NC * HW,
        transcendentals=0,
        bytes_accessed=NC * HW * itemsize + NC * itemsize)

    if num_k == 1:
        out = pl.pallas_call(
            functools.partial(_mean_rows_kernel, scale=scale),
            out_shape=jax.ShapeDtypeStruct((1, NC), dtype),
            grid_spec=pltpu.PrefetchScalarGridSpec(
                num_scalar_prefetch=0,
                grid=(num_i,),
                in_specs=[pl.BlockSpec((tr, HW), lambda i: (i, 0))],
                # Lane-dense output slab: one (1, tr) row per row tile.
                out_specs=pl.BlockSpec((1, tr), lambda i: (0, i)),
            ),
            compiler_params=pltpu.CompilerParams(
                dimension_semantics=("parallel",)),
            cost_estimate=cost,
        )(xf)
    else:
        out = pl.pallas_call(
            functools.partial(_mean_rows_acc_kernel,
                              scale=scale, hw=HW, tl=tl),
            out_shape=jax.ShapeDtypeStruct((1, NC), dtype),
            grid_spec=pltpu.PrefetchScalarGridSpec(
                num_scalar_prefetch=0,
                grid=(num_i, num_k),
                in_specs=[pl.BlockSpec((tr, tl), lambda i, k: (i, k))],
                out_specs=pl.BlockSpec((1, tr), lambda i, k: (0, i)),
                scratch_shapes=[pltpu.VMEM((1, tr), jnp.float32)],
            ),
            compiler_params=pltpu.CompilerParams(
                dimension_semantics=("parallel", "arbitrary")),
            cost_estimate=cost,
        )(xf)

    return out[0].reshape(N, C)


def expression_global_mean(x, *, min_pallas_bytes=_PALLAS_MIN_BYTES):
    """Expression(lambda t: t.mean(dim=[2, 3])): global average pool NCHW -> NC."""
    if x.size * x.dtype.itemsize < min_pallas_bytes:
        # Tiny feature maps (the shapes this Expression actually sees in the
        # speech-command model): the Pallas call would be pure fixed overhead.
        return jnp.mean(x, axis=(2, 3))
    return _global_mean_pallas(x)


class Expression:
    """JAX/Pallas analogue of Expression(func): applies `func` to its input."""

    def __init__(self, func):
        self.func = func

    def __call__(self, x):
        return self.func(x)


if __name__ == "__main__":
    key = jax.random.PRNGKey(0)
    k0, k1, k2, k3 = jax.random.split(key, 4)

    global_pool = Expression(expression_global_mean)

    # 1) Small NCHW feature map consistent with the conv features this
    #    Expression sees: batch=2, channels=4, 16x16 spatial.  Exercise the
    #    Pallas kernel directly (single full-array block path).
    x = jax.random.normal(k0, (2, 4, 16, 16), dtype=jnp.float32)
    y = _global_mean_pallas(x)
    jax.block_until_ready(y)
    y_ref = jnp.mean(x, axis=(2, 3))
    assert y.shape == y_ref.shape == (2, 4)
    assert jnp.allclose(y, y_ref, atol=1e-5, rtol=1e-5)

    # Dispatch wrapper (tiny inputs bypass Pallas and use the fused XLA reduce).
    y2 = global_pool(x)
    jax.block_until_ready(y2)
    assert jnp.allclose(y2, y_ref, atol=1e-5, rtol=1e-5)

    # 2) Larger shape: >=2 row tiles on the "parallel" axis (dual-TC split),
    #    full H*W reduction in a single grid step per row tile.
    xl = jax.random.normal(k1, (16, 128, 32, 32), dtype=jnp.float32)
    yl = global_pool(xl)
    jax.block_until_ready(yl)
    assert jnp.allclose(yl, jnp.mean(xl, axis=(2, 3)), atol=1e-4, rtol=1e-4)

    # 3) Non-128-multiple spatial size: single full-dim lane block, no
    #    host-side padding and no masking needed.
    xp = jax.random.normal(k2, (4, 16, 100, 100), dtype=jnp.float32)
    yp = global_pool(xp)
    jax.block_until_ready(yp)
    assert jnp.allclose(yp, jnp.mean(xp, axis=(2, 3)), atol=1e-4, rtol=1e-4)

    # 4) Very wide H*W: lane-tiled reduction with the in-kernel iota mask over
    #    the ragged last lane tile and the f32 VMEM accumulator.
    xw = jax.random.normal(k3, (2, 64, 136, 136), dtype=jnp.float32)
    yw = global_pool(xw)
    jax.block_until_ready(yw)
    assert jnp.allclose(yw, jnp.mean(xw, axis=(2, 3)), atol=1e-4, rtol=1e-4)

    print("KERNEL_OK")
</pallas_src>

<mosaic_0001>
module attributes {stable_mosaic.version = 11 : i64} {
  func.func @_mean_rows_kernel(%arg0: i32, %arg1: memref<8x256xf32, #tpu.memory_space<vmem>>, %arg2: memref<1x8xf32, #tpu.memory_space<vmem>>) attributes {dimension_semantics = [#tpu.dimension_semantics<parallel>], iteration_bounds = array<i64: 1>, scalar_prefetch = 0 : i64, scratch_operands = 0 : i64, tpu.core_type = #tpu.core_type<tc>, window_params = [{transform_indices = @transform_0, window_bounds = array<i64: 8, 256>}, {transform_indices = @transform_1, window_bounds = array<i64: 1, 8>}]} {
    %c0 = arith.constant 0 : index
    %c0_0 = arith.constant 0 : index
    %0 = vector.load %arg1[%c0, %c0_0] : memref<8x256xf32, #tpu.memory_space<vmem>>, vector<8x256xf32>
    %cst = arith.constant dense<0.000000e+00> : vector<8xf32>
    %1 = vector.multi_reduction <add>, %0, %cst [1] : vector<8x256xf32> to vector<8xf32>
    %2 = vector.shape_cast %1 : vector<8xf32> to vector<1x8xf32>
    %cst_1 = arith.constant 3.906250e-03 : f32
    %3 = vector.broadcast %cst_1 : f32 to vector<1x8xf32>
    %4 = arith.mulf %2, %3 : vector<1x8xf32>
    %c0_2 = arith.constant 0 : index
    %c0_3 = arith.constant 0 : index
    %5 = vector.load %arg2[%c0_2, %c0_3] : memref<1x8xf32, #tpu.memory_space<vmem>>, vector<1x8xf32>
    tpu.vector_store %arg2[%c0_2, %c0_3], %4 {strides = array<i32>} : memref<1x8xf32, #tpu.memory_space<vmem>>, vector<1x8xf32>,
    return
  }
  func.func @transform_0(%arg0: i32) -> (i32, i32) {
    %c0_i32 = arith.constant 0 : i32
    %c0_i32_0 = arith.constant 0 : i32
    return %arg0, %c0_i32 : i32, i32
  }
  func.func @transform_1(%arg0: i32) -> (i32, i32) {
    %c0_i32 = arith.constant 0 : i32
    %c0_i32_0 = arith.constant 0 : i32
    return %c0_i32, %arg0 : i32, i32
  }
}

</mosaic_0001>

<llo_original>
// kernel: tpu_custom_call.1
$region0: #{tpu_custom_call.1}
  #allocation0 [shape = 'u32[]', space=smem, size = 0x4, offset = 0x4, fixed_abs, tag = 'smem constant byte address 0x4 - core index']
  #allocation1 [shape = 'u32[144,128]{1,0:T(1,128)}', space=vmem, size = 0x12000, scoped, tag = 'internal scratch']
  %s0 = inlined_call_operand.hbm [shape: f32[8,256], index: 0, kind: input, shape index: {}]
  %s1 = inlined_call_operand.hbm [shape: f32[1,8], index: 1, kind: output, shape index: {}]
  %s2 = sld [smem:[#allocation0]]
  $region18: #{tpu_custom_call.1} parent=0
    _
  %s4 = ssub.s32 1, %s2
  %s5 = scalar_select 0, %s4, %s2
  $region1: #{tpu_custom_call.1} parent=0
    #allocation2 [shape = 'u8[8192]{0}', space=vmem, size = 0x2000, scoped, tag = 'input window, operand 0, single buffered']
    #allocation3 [shape = 's32[1]{0}', space=sflag, size = 0x4, scoped, tag = 'scoped memory for tpu_custom_call.1']
    #allocation4 [shape = 's32[1]{0}', space=sflag, size = 0x4, scoped, tag = 'scoped memory for tpu_custom_call.1']
    #allocation5 [shape = 'u8[512]{0}', space=vmem, size = 0x400, scoped, tag = 'output window, operand 0, single buffered']
    %6 = vsyncpa [#allocation3], 0
    %7 = vsyncpa [#allocation4], 0
    // Predicated region
    $region2: #{tpu_custom_call.1} parent=1 // pred_check
      _
    $region3: #{tpu_custom_call.1} parent=1 // pred_check_branch
      %9 = sbr.rel (0) target = $region5
    $region4: #{tpu_custom_call.1} parent=1 // pred_region
      %s11 = ssub.s32 256, 256
      %12 = vsyncadd [#allocation3], %s11
      %s14 = sshll.u32 [#allocation2], 4
      %s15 = int_to_ptr.vmem [resolvable:$true] %s14
      %17 = dma.hbm_to_vmem [thread:$0]  %s0, 256, %s15, [#allocation3]
    $region5: #{tpu_custom_call.1} parent=1 // pred_fallthru
      _
    // Predicated region
    $region6: #{tpu_custom_call.1} parent=1 // pred_check
      _
    $region7: #{tpu_custom_call.1} parent=1 // pred_check_branch
      %19 = sbr.rel (0) target = $region9
    $region8: #{tpu_custom_call.1} parent=1 // pred_region
      %20 = dma.done [#allocation3], 256
    $region9: #{tpu_custom_call.1} parent=1 // pred_fallthru
      _
    %v21 = vld [vmem:[#allocation2] sm:$0xff]
    %v22 = vld [vmem:[#allocation2 + $0x8] sm:$0xff]
    %v23 = vadd.f32 %v21, %v22
    %24 = vadd.xlane.f32.xlu0 %v23
    %v25 = vpop.xlane.xlu0 %24
    %v26 = vmul.f32 %v25, 0.00390625
    %v28 = vlaneseq
    %v29 = vand.u32 %v28, 127
    %v30 = vlaneseq
    %v31 = vshrl.u32 %v30, 7
    %v32 = vsub.s32 %v29, %v31
    %v33 = vrot.slane %v26, %v32
    %vm35 = vcmask 57344
    %36 = vst.msk [vmem:[#allocation5] sm:$0x1] %vm35, %v33
    // Predicated region
    $region10: #{tpu_custom_call.1} parent=1 // pred_check
      _
    $region11: #{tpu_custom_call.1} parent=1 // pred_check_branch
      %38 = sbr.rel (0) target = $region13
    $region12: #{tpu_custom_call.1} parent=1 // pred_region
      %s40 = ssub.s32 16, 16
      %41 = vsyncadd [#allocation4], %s40
      %s43 = sshll.u32 [#allocation5], 4
      %s44 = int_to_ptr.vmem [resolvable:$true] %s43
      %46 = dma.vmem_to_hbm [thread:$0]  %s44, 16, %s1, [#allocation4]
    $region13: #{tpu_custom_call.1} parent=1 // pred_fallthru
      _
    // Predicated region
    $region14: #{tpu_custom_call.1} parent=1 // pred_check
      _
    $region15: #{tpu_custom_call.1} parent=1 // pred_check_branch
      %48 = sbr.rel (0) target = $region17
    $region16: #{tpu_custom_call.1} parent=1 // pred_region
      %49 = dma.done [#allocation4], 16
    $region17: #{tpu_custom_call.1} parent=1 // pred_fallthru
      _
    %50 = vsyncpa [#allocation3], 1
    %51 = vsyncpa [#allocation4], 1

</llo_original>
